<compile_context>
chip_gen: v7x
topology: tpu7x:2x2x1
jax: 0.10.0
libtpu: 0.0.40
codegen_flags: <defaults>
</compile_context>

<pallas_src>
import functools
import math

import jax
import jax.numpy as jnp
import numpy as np
from jax import lax
from jax.experimental import pallas as pl
from jax.experimental.pallas import tpu as pltpu


# ----------------------------------------------------------------------------
# helpers
# ----------------------------------------------------------------------------

def _round_up(n: int, m: int) -> int:
    return ((n + m - 1) // m) * m


def _seq_tile(seq_len: int, target: int) -> int:
    """Sequence tile: multiple of 8, at most `target`; the sequence is padded
    up to a multiple of the returned tile (never a whole-T fallback tile)."""
    target = max(8, (target // 8) * 8)
    return min(target, _round_up(seq_len, 8))


def _rope_tables(token_positions, d_k, num_heads, theta, dtype):
    """Interleave-expanded cos/sin tables, tiled across heads -> (T, D)."""
    inv_freq = theta ** (-jnp.arange(0, d_k, 2, dtype=jnp.float32) / d_k)   # (d_k/2,)
    ang = token_positions.astype(jnp.float32)[:, None] * inv_freq[None, :]  # (T, d_k/2)
    cos = jnp.repeat(jnp.cos(ang), 2, axis=-1)                              # (T, d_k)
    sin = jnp.repeat(jnp.sin(ang), 2, axis=-1)
    cos = jnp.tile(cos, (1, num_heads)).astype(dtype)                       # (T, D)
    sin = jnp.tile(sin, (1, num_heads)).astype(dtype)
    return cos, sin


# ----------------------------------------------------------------------------
# Weight preparation (one time, OUTSIDE the hot path)
# ----------------------------------------------------------------------------

def prepare_weights(wq, wk, wv, wo, num_heads):
    """PyTorch Linear weights are (out, in) applied as y = x @ W.T:
      * pre-transpose all weights,
      * fold 1/sqrt(d_k) into the Q weight (commutes with the linear RoPE),
      * fold the signed pair-swap permutation P of RoPE into extra weight
        columns (rot(x @ W) = x @ (W @ P)),
      * fuse everything into one projection weight per path.
    """
    D = wq.shape[0]
    assert D % num_heads == 0
    d_k = D // num_heads
    assert d_k % 2 == 0
    scale = 1.0 / math.sqrt(d_k)

    wq_t = wq.T * jnp.asarray(scale, wq.dtype)
    wk_t = wk.T
    wv_t = wv.T
    wo_t = wo.T

    # Signed pair-swap permutation: (t @ P)[:, 2i] = -t[:, 2i+1],
    #                               (t @ P)[:, 2i+1] = t[:, 2i].
    p = np.zeros((D, D), dtype=np.float32)
    even = np.arange(0, D, 2)
    p[even + 1, even] = -1.0
    p[even, even + 1] = 1.0
    p = jnp.asarray(p, dtype=wq_t.dtype)

    w_qkv = jnp.concatenate([wq_t, wk_t, wv_t], axis=1)                       # (D, 3D)
    w_qkv_rope = jnp.concatenate([wq_t, wk_t, wv_t, wq_t @ p, wk_t @ p],
                                 axis=1)                                      # (D, 5D)
    return {"w_qkv": w_qkv, "w_qkv_rope": w_qkv_rope, "wo_t": wo_t,
            "num_heads": num_heads}


# ----------------------------------------------------------------------------
# Kernel 1: fused QKV projection (+ optional RoPE)
# ----------------------------------------------------------------------------

def _qkv_rope_kernel(x_ref, w_ref, cos_ref, sin_ref, q_ref, k_ref, v_ref, *,
                     d_model):
    D = d_model
    x = x_ref[0]                                                     # (Tt, D)
    y = jnp.dot(x, w_ref[...], preferred_element_type=jnp.float32)  # (Tt, 5D)
    cos = cos_ref[...]
    sin = sin_ref[...]
    q = y[:, 0 * D:1 * D]
    k = y[:, 1 * D:2 * D]
    v = y[:, 2 * D:3 * D]
    q_rot = y[:, 3 * D:4 * D]
    k_rot = y[:, 4 * D:5 * D]
    q_ref[0] = (q * cos + q_rot * sin).astype(q_ref.dtype)
    k_ref[0] = (k * cos + k_rot * sin).astype(k_ref.dtype)
    v_ref[0] = v.astype(v_ref.dtype)


def _qkv_kernel(x_ref, w_ref, q_ref, k_ref, v_ref, *, d_model):
    # token_positions is None -> RoPE skipped (matches the PyTorch module).
    D = d_model
    x = x_ref[0]
    y = jnp.dot(x, w_ref[...], preferred_element_type=jnp.float32)  # (Tt, 3D)
    q_ref[0] = y[:, 0 * D:1 * D].astype(q_ref.dtype)
    k_ref[0] = y[:, 1 * D:2 * D].astype(k_ref.dtype)
    v_ref[0] = y[:, 2 * D:3 * D].astype(v_ref.dtype)


# ----------------------------------------------------------------------------
# Kernel 2: flash attention (online softmax) + output projection
# ----------------------------------------------------------------------------

def _flash_attn_kernel(q_ref, k_ref, v_ref, wo_ref, o_ref,
                       m_scr, l_scr, acc_scr,
                       *, num_heads, d_k, q_tile, kv_tile):
    qi = pl.program_id(1)
    ki = pl.program_id(2)
    nk = pl.num_programs(2)

    @pl.when(ki == 0)
    def _init():
        m_scr[...] = jnp.full(m_scr.shape, -jnp.inf, m_scr.dtype)
        l_scr[...] = jnp.zeros(l_scr.shape, l_scr.dtype)
        acc_scr[...] = jnp.zeros(acc_scr.shape, acc_scr.dtype)

    first_q = qi * q_tile
    last_q = first_q + (q_tile - 1)
    first_kv = ki * kv_tile
    last_kv = first_kv + (kv_tile - 1)
    needed = first_kv <= last_q       # tile intersects the causal region
    interior = last_kv <= first_q     # tile entirely below the diagonal -> no mask

    def step(apply_mask):
        q = q_ref[0]                                         # (Tq, D), scale folded in
        k = k_ref[0]                                         # (Tk, D)
        v = v_ref[0]                                         # (Tk, D)
        if apply_mask:
            row = first_q + lax.broadcasted_iota(jnp.int32, (q_tile, kv_tile), 0)
            col = first_kv + lax.broadcasted_iota(jnp.int32, (q_tile, kv_tile), 1)
            causal = col <= row
        for h in range(num_heads):                           # static unroll (small H)
            sl = slice(h * d_k, (h + 1) * d_k)
            # q @ k^T with the transpose folded into the MXU feed.
            s = lax.dot_general(q[:, sl], k[:, sl], (((1,), (1,)), ((), ())),
                                preferred_element_type=jnp.float32)
            if apply_mask:
                s = jnp.where(causal, s, -1e30)
            m_prev = m_scr[:, h:h + 1]                       # (Tq, 1) f32
            l_prev = l_scr[:, h:h + 1]
            m_new = jnp.maximum(m_prev, jnp.max(s, axis=-1, keepdims=True))
            alpha = jnp.exp(m_prev - m_new)
            p = jnp.exp(s - m_new)                           # (Tq, Tk) f32
            l_scr[:, h:h + 1] = alpha * l_prev + jnp.sum(p, axis=-1, keepdims=True)
            acc_scr[:, sl] = alpha * acc_scr[:, sl] + jnp.dot(
                p.astype(v.dtype), v[:, sl], preferred_element_type=jnp.float32)
            m_scr[:, h:h + 1] = m_new

    @pl.when(interior)                       # fully unmasked: no iota/compare/select
    def _interior():
        step(apply_mask=False)

    @pl.when(jnp.logical_and(needed, jnp.logical_not(interior)))
    def _diagonal():                         # diagonal-crossing: apply causal mask
        step(apply_mask=True)

    @pl.when(ki == nk - 1)
    def _finalize():
        # One reciprocal for all heads, per-head in-place normalization (heads
        # occupy disjoint column ranges -> no concatenate), then ONE output
        # projection matmul.
        inv_all = 1.0 / l_scr[...]                           # (Tq, H) f32, exact
        for h in range(num_heads):
            sl = slice(h * d_k, (h + 1) * d_k)
            acc_scr[:, sl] = acc_scr[:, sl] * inv_all[:, h:h + 1]
        attn = acc_scr[...].astype(wo_ref.dtype)
        o_ref[0] = jnp.dot(attn, wo_ref[...],
                           preferred_element_type=jnp.float32).astype(o_ref.dtype)


# ----------------------------------------------------------------------------
# Wrapper
# ----------------------------------------------------------------------------

def causal_mha_forward(x, params, *, theta=10000.0, token_positions=None,
                       q_tile=256, kv_tile=256, proj_tile=256,
                       vmem_limit_bytes=40 * 1024 * 1024):
    """Pallas implementation of CausalMultiHeadSelfAttention.forward.

    x: (B, T, D); params: output of prepare_weights; token_positions: optional
    (T,) int positions (RoPE skipped when None, like the PyTorch module).
    Tune (q_tile, kv_tile): grow q_tile on v5e/v6e (128 MiB VMEM), keep
    q_tile<=256 / kv_tile<=256-384 on v7x (64 MiB/TC).
    """
    num_heads = params["num_heads"]
    wo_t = params["wo_t"]
    B, T, D = x.shape
    assert D % num_heads == 0
    d_k = D // num_heads

    tt = _seq_tile(T, proj_tile)   # projection row tile
    tq = _seq_tile(T, q_tile)      # query tile
    tk = _seq_tile(T, kv_tile)     # kv tile
    # Pad T so every tile divides it.  Padded key columns fall strictly above
    # the causal diagonal of every real query row (masked / skipped); padded
    # query rows are garbage-but-finite and sliced off at the end.
    t_pad = _round_up(T, math.lcm(tt, tq, tk))
    if t_pad != T:
        x = jnp.pad(x, ((0, 0), (0, t_pad - T), (0, 0)))
        if token_positions is not None:
            token_positions = jnp.pad(token_positions, (0, t_pad - T))

    proj_cp = pltpu.CompilerParams(
        dimension_semantics=("parallel", "parallel"),
        vmem_limit_bytes=vmem_limit_bytes)

    qkv_shapes = tuple(jax.ShapeDtypeStruct((B, t_pad, D), x.dtype) for _ in range(3))
    qkv_out_specs = tuple(pl.BlockSpec((1, tt, D), lambda i, b: (b, i, 0))
                          for _ in range(3))
    x_spec = pl.BlockSpec((1, tt, D), lambda i, b: (b, i, 0))
    proj_grid = (t_pad // tt, B)   # batch innermost -> cos/sin reused across b

    if token_positions is None:
        w_spec = pl.BlockSpec((D, 3 * D), lambda i, b: (0, 0))   # resident weight
        q_r, k_r, v_r = pl.pallas_call(
            functools.partial(_qkv_kernel, d_model=D),
            out_shape=qkv_shapes,
            grid=proj_grid,
            in_specs=[x_spec, w_spec],
            out_specs=qkv_out_specs,
            compiler_params=proj_cp,
        )(x, params["w_qkv"])
    else:
        cos_f, sin_f = _rope_tables(token_positions, d_k, num_heads, theta, x.dtype)
        w_spec = pl.BlockSpec((D, 5 * D), lambda i, b: (0, 0))   # resident weight
        cs_spec = pl.BlockSpec((tt, D), lambda i, b: (i, 0))     # reused across b
        q_r, k_r, v_r = pl.pallas_call(
            functools.partial(_qkv_rope_kernel, d_model=D),
            out_shape=qkv_shapes,
            grid=proj_grid,
            in_specs=[x_spec, w_spec, cs_spec, cs_spec],
            out_specs=qkv_out_specs,
            compiler_params=proj_cp,
        )(x, params["w_qkv_rope"], cos_f, sin_f)

    def kv_index_map(b, i, j):
        # Clamp to the last causally-needed KV tile: skipped above-diagonal grid
        # steps re-reference the already-resident block so their DMA is elided.
        return (b, jnp.minimum(j, ((i + 1) * tq - 1) // tk), 0)

    attn_kernel = functools.partial(_flash_attn_kernel, num_heads=num_heads,
                                    d_k=d_k, q_tile=tq, kv_tile=tk)
    out = pl.pallas_call(
        attn_kernel,
        out_shape=jax.ShapeDtypeStruct((B, t_pad, D), x.dtype),
        grid=(B, t_pad // tq, t_pad // tk),
        in_specs=[
            pl.BlockSpec((1, tq, D), lambda b, i, j: (b, i, 0)),   # q (reused over j)
            pl.BlockSpec((1, tk, D), kv_index_map),                # k (clamped)
            pl.BlockSpec((1, tk, D), kv_index_map),                # v (clamped)
            pl.BlockSpec((D, D), lambda b, i, j: (0, 0)),          # wo^T (resident)
        ],
        out_specs=pl.BlockSpec((1, tq, D), lambda b, i, j: (b, i, 0)),
        scratch_shapes=[
            pltpu.VMEM((tq, num_heads), jnp.float32),   # running max m per head
            pltpu.VMEM((tq, num_heads), jnp.float32),   # running sum l per head
            pltpu.VMEM((tq, D), jnp.float32),           # un-normalized attention
        ],
        compiler_params=pltpu.CompilerParams(
            dimension_semantics=("parallel", "parallel", "arbitrary"),
            vmem_limit_bytes=vmem_limit_bytes),
    )(q_r, k_r, v_r, wo_t)

    if t_pad != T:
        out = out[:, :T, :]
    return out


# ----------------------------------------------------------------------------
# Pure-JAX reference (mirrors the PyTorch module semantics)
# ----------------------------------------------------------------------------

def reference_mha(x, wq, wk, wv, wo, num_heads, theta, token_positions):
    B, T, D = x.shape
    d_k = D // num_heads
    q = x @ wq.T
    k = x @ wk.T
    v = x @ wv.T

    def split(t):
        return t.reshape(B, T, num_heads, d_k).transpose(0, 2, 1, 3)  # (B,H,T,d_k)

    q, k, v = split(q), split(k), split(v)

    inv_freq = theta ** (-jnp.arange(0, d_k, 2, dtype=jnp.float32) / d_k)
    ang = token_positions.astype(jnp.float32)[:, None] * inv_freq[None, :]
    cos, sin = jnp.cos(ang), jnp.sin(ang)

    def rope(t):
        t1, t2 = t[..., 0::2], t[..., 1::2]
        r1 = t1 * cos - t2 * sin
        r2 = t1 * sin + t2 * cos
        return jnp.stack([r1, r2], axis=-1).reshape(t.shape)

    q, k = rope(q), rope(k)
    s = jnp.einsum('bhqd,bhkd->bhqk', q, k) / math.sqrt(d_k)
    mask = jnp.tril(jnp.ones((T, T), bool))
    s = jnp.where(mask, s, -jnp.inf)
    p = jax.nn.softmax(s, axis=-1)
    o = jnp.einsum('bhqk,bhkd->bhqd', p, v)
    o = o.transpose(0, 2, 1, 3).reshape(B, T, D)
    return o @ wo.T


if __name__ == "__main__":
    # Small shapes consistent with the module: batch=2, seq=8, d_model=128, heads=4.
    B, T, D, H = 2, 8, 128, 4
    theta = 10000.0

    key = jax.random.PRNGKey(0)
    kx, kq, kk, kv, ko = jax.random.split(key, 5)
    s = 1.0 / math.sqrt(D)
    x = jax.random.normal(kx, (B, T, D), jnp.float32)
    wq = jax.random.normal(kq, (D, D), jnp.float32) * s
    wk = jax.random.normal(kk, (D, D), jnp.float32) * s
    wv = jax.random.normal(kv, (D, D), jnp.float32) * s
    wo = jax.random.normal(ko, (D, D), jnp.float32) * s
    token_positions = jnp.arange(T, dtype=jnp.int32)

    params = prepare_weights(wq, wk, wv, wo, num_heads=H)   # once, outside hot path

    out = causal_mha_forward(x, params, theta=theta,
                             token_positions=token_positions)
    out = jax.block_until_ready(out)

    ref = reference_mha(x, wq, wk, wv, wo, H, theta, token_positions)
    np.testing.assert_allclose(np.asarray(out), np.asarray(ref), rtol=2e-2, atol=2e-2)

    print("KERNEL_OK")
</pallas_src>

<mosaic_0001>
module attributes {stable_mosaic.version = 11 : i64} {
  func.func @_qkv_rope_kernel(%arg0: i32, %arg1: i32, %arg2: memref<1x8x128xf32, #tpu.memory_space<vmem>>, %arg3: memref<128x640xf32, #tpu.memory_space<vmem>>, %arg4: memref<8x128xf32, #tpu.memory_space<vmem>>, %arg5: memref<8x128xf32, #tpu.memory_space<vmem>>, %arg6: memref<1x8x128xf32, #tpu.memory_space<vmem>>, %arg7: memref<1x8x128xf32, #tpu.memory_space<vmem>>, %arg8: memref<1x8x128xf32, #tpu.memory_space<vmem>>) attributes {dimension_semantics = [#tpu.dimension_semantics<parallel>, #tpu.dimension_semantics<parallel>], iteration_bounds = array<i64: 1, 2>, scalar_prefetch = 0 : i64, scratch_operands = 0 : i64, tpu.core_type = #tpu.core_type<tc>, window_params = [{transform_indices = @transform_0, window_bounds = array<i64: 1, 8, 128>}, {pipeline_mode = #tpu.pipeline_mode<synchronous>, transform_indices = @transform_1, window_bounds = array<i64: 128, 640>}, {transform_indices = @transform_2, window_bounds = array<i64: 8, 128>}, {transform_indices = @transform_3, window_bounds = array<i64: 8, 128>}, {transform_indices = @transform_4, window_bounds = array<i64: 1, 8, 128>}, {transform_indices = @transform_5, window_bounds = array<i64: 1, 8, 128>}, {transform_indices = @transform_6, window_bounds = array<i64: 1, 8, 128>}]} {
    %c0 = arith.constant 0 : index
    %c0_0 = arith.constant 0 : index
    %c0_1 = arith.constant 0 : index
    %0 = vector.load %arg2[%c0, %c0_0, %c0_1] : memref<1x8x128xf32, #tpu.memory_space<vmem>>, vector<1x8x128xf32>
    %1 = vector.shape_cast %0 : vector<1x8x128xf32> to vector<8x128xf32>
    %c0_2 = arith.constant 0 : index
    %c0_3 = arith.constant 0 : index
    %2 = vector.load %arg3[%c0_2, %c0_3] : memref<128x640xf32, #tpu.memory_space<vmem>>, vector<128x640xf32>
    %cst = arith.constant dense<0.000000e+00> : vector<8x640xf32>
    %3 = tpu.matmul %1, %2, %cst {dimension_numbers = #tpu.dot_dimension_numbers<[1], [0], [0], [1], [0, 0, 1, 1], [], []>} : vector<8x128xf32>, vector<128x640xf32>, vector<8x640xf32> -> vector<8x640xf32>
    %c0_4 = arith.constant 0 : index
    %c0_5 = arith.constant 0 : index
    %4 = vector.load %arg4[%c0_4, %c0_5] : memref<8x128xf32, #tpu.memory_space<vmem>>, vector<8x128xf32>
    %c0_6 = arith.constant 0 : index
    %c0_7 = arith.constant 0 : index
    %5 = vector.load %arg5[%c0_6, %c0_7] : memref<8x128xf32, #tpu.memory_space<vmem>>, vector<8x128xf32>
    %6 = vector.extract_strided_slice %3 {offsets = [0, 0], sizes = [8, 128], strides = [1, 1]} : vector<8x640xf32> to vector<8x128xf32>
    %7 = vector.extract_strided_slice %3 {offsets = [0, 128], sizes = [8, 128], strides = [1, 1]} : vector<8x640xf32> to vector<8x128xf32>
    %8 = vector.extract_strided_slice %3 {offsets = [0, 256], sizes = [8, 128], strides = [1, 1]} : vector<8x640xf32> to vector<8x128xf32>
    %9 = vector.extract_strided_slice %3 {offsets = [0, 384], sizes = [8, 128], strides = [1, 1]} : vector<8x640xf32> to vector<8x128xf32>
    %10 = vector.extract_strided_slice %3 {offsets = [0, 512], sizes = [8, 128], strides = [1, 1]} : vector<8x640xf32> to vector<8x128xf32>
    %11 = arith.mulf %6, %4 : vector<8x128xf32>
    %12 = arith.mulf %9, %5 : vector<8x128xf32>
    %13 = arith.addf %11, %12 : vector<8x128xf32>
    %c0_8 = arith.constant 0 : index
    %c0_9 = arith.constant 0 : index
    %c0_10 = arith.constant 0 : index
    %14 = vector.load %arg6[%c0_8, %c0_9, %c0_10] : memref<1x8x128xf32, #tpu.memory_space<vmem>>, vector<1x8x128xf32>
    %15 = vector.shape_cast %14 : vector<1x8x128xf32> to vector<8x128xf32>
    %16 = vector.shape_cast %13 : vector<8x128xf32> to vector<1x8x128xf32>
    tpu.vector_store %arg6[%c0_8, %c0_9, %c0_10], %16 {strides = array<i32>} : memref<1x8x128xf32, #tpu.memory_space<vmem>>, vector<1x8x128xf32>,
    %17 = arith.mulf %7, %4 : vector<8x128xf32>
    %18 = arith.mulf %10, %5 : vector<8x128xf32>
    %19 = arith.addf %17, %18 : vector<8x128xf32>
    %c0_11 = arith.constant 0 : index
    %c0_12 = arith.constant 0 : index
    %c0_13 = arith.constant 0 : index
    %20 = vector.load %arg7[%c0_11, %c0_12, %c0_13] : memref<1x8x128xf32, #tpu.memory_space<vmem>>, vector<1x8x128xf32>
    %21 = vector.shape_cast %20 : vector<1x8x128xf32> to vector<8x128xf32>
    %22 = vector.shape_cast %19 : vector<8x128xf32> to vector<1x8x128xf32>
    tpu.vector_store %arg7[%c0_11, %c0_12, %c0_13], %22 {strides = array<i32>} : memref<1x8x128xf32, #tpu.memory_space<vmem>>, vector<1x8x128xf32>,
    %c0_14 = arith.constant 0 : index
    %c0_15 = arith.constant 0 : index
    %c0_16 = arith.constant 0 : index
    %23 = vector.load %arg8[%c0_14, %c0_15, %c0_16] : memref<1x8x128xf32, #tpu.memory_space<vmem>>, vector<1x8x128xf32>
    %24 = vector.shape_cast %23 : vector<1x8x128xf32> to vector<8x128xf32>
    %25 = vector.shape_cast %8 : vector<8x128xf32> to vector<1x8x128xf32>
    tpu.vector_store %arg8[%c0_14, %c0_15, %c0_16], %25 {strides = array<i32>} : memref<1x8x128xf32, #tpu.memory_space<vmem>>, vector<1x8x128xf32>,
    return
  }
  func.func @transform_0(%arg0: i32, %arg1: i32) -> (i32, i32, i32) {
    %c0_i32 = arith.constant 0 : i32
    %c0_i32_0 = arith.constant 0 : i32
    return %arg1, %arg0, %c0_i32 : i32, i32, i32
  }
  func.func @transform_1(%arg0: i32, %arg1: i32) -> (i32, i32) {
    %c0_i32 = arith.constant 0 : i32
    %c0_i32_0 = arith.constant 0 : i32
    %c0_i32_1 = arith.constant 0 : i32
    return %c0_i32, %c0_i32_0 : i32, i32
  }
  func.func @transform_2(%arg0: i32, %arg1: i32) -> (i32, i32) {
    %c0_i32 = arith.constant 0 : i32
    %c0_i32_0 = arith.constant 0 : i32
    return %arg0, %c0_i32 : i32, i32
  }
  func.func @transform_3(%arg0: i32, %arg1: i32) -> (i32, i32) {
    %c0_i32 = arith.constant 0 : i32
    %c0_i32_0 = arith.constant 0 : i32
    return %arg0, %c0_i32 : i32, i32
  }
  func.func @transform_4(%arg0: i32, %arg1: i32) -> (i32, i32, i32) {
    %c0_i32 = arith.constant 0 : i32
    %c0_i32_0 = arith.constant 0 : i32
    return %arg1, %arg0, %c0_i32 : i32, i32, i32
  }
  func.func @transform_5(%arg0: i32, %arg1: i32) -> (i32, i32, i32) {
    %c0_i32 = arith.constant 0 : i32
    %c0_i32_0 = arith.constant 0 : i32
    return %arg1, %arg0, %c0_i32 : i32, i32, i32
  }
  func.func @transform_6(%arg0: i32, %arg1: i32) -> (i32, i32, i32) {
    %c0_i32 = arith.constant 0 : i32
    %c0_i32_0 = arith.constant 0 : i32
    return %arg1, %arg0, %c0_i32 : i32, i32, i32
  }
}

</mosaic_0001>

<llo_original>
// kernel: tpu_custom_call.1
$region0: #{tpu_custom_call.1}
  #allocation0 [shape = 'u32[]', space=smem, size = 0x4, offset = 0x4, fixed_abs, tag = 'smem constant byte address 0x4 - core index']
  #allocation1 [shape = 'u32[144,128]{1,0:T(1,128)}', space=vmem, size = 0x12000, scoped, tag = 'internal scratch']
  %s0 = inlined_call_operand.hbm [shape: f32[2,8,128], index: 0, kind: input, shape index: {}]
  %s1 = inlined_call_operand.hbm [shape: f32[128,640], index: 1, kind: input, shape index: {}]
  %s2 = inlined_call_operand.hbm [shape: f32[8,128], index: 2, kind: input, shape index: {}]
  %s3 = inlined_call_operand.vmem [shape: f32[8,128], index: 3, kind: input, shape index: {}]
  %s4 = inlined_call_operand.hbm [shape: f32[2,8,128], index: 4, kind: output, shape index: {0}]
  %s5 = inlined_call_operand.hbm [shape: f32[2,8,128], index: 5, kind: output, shape index: {1}]
  %s6 = inlined_call_operand.hbm [shape: f32[2,8,128], index: 6, kind: output, shape index: {2}]
  %7 = xla_tuple %s4, %s5, %s6
  %s8 = sld [smem:[#allocation0]]
  $region77: #{tpu_custom_call.1} parent=0
    _
  %s10 = ssub.s32 1, %s8
  %s11 = scalar_select 0, %s10, %s8
  $region1: #{tpu_custom_call.1} parent=0
    #allocation2 [shape = 'u8[8192]{0}', space=vmem, size = 0x2000, scoped, tag = 'input window, operand 0']
    #allocation3 [shape = 's32[2]{0}', space=sflag, size = 0x8, scoped, tag = 'scoped memory for tpu_custom_call.1']
    #allocation4 [shape = 's32[2]{0}', space=sflag, size = 0x8, scoped, tag = 'scoped memory for tpu_custom_call.1']
    #allocation5 [shape = 'u8[327680]{0}', space=vmem, size = 0x50000, scoped, tag = 'input window, operand 1, single buffered']
    #allocation6 [shape = 's32[1]{0}', space=sflag, size = 0x4, scoped, tag = 'scoped memory for tpu_custom_call.1']
    #allocation7 [shape = 'u8[4096]{0}', space=vmem, size = 0x1000, scoped, tag = 'input window, operand 2, single buffered']
    #allocation8 [shape = 'u8[8192]{0}', space=vmem, size = 0x2000, scoped, tag = 'output window, operand 0']
    #allocation9 [shape = 'u8[8192]{0}', space=vmem, size = 0x2000, scoped, tag = 'output window, operand 1']
    #allocation10 [shape = 's32[2]{0}', space=sflag, size = 0x8, scoped, tag = 'scoped memory for tpu_custom_call.1']
    #allocation11 [shape = 'u8[8192]{0}', space=vmem, size = 0x2000, scoped, tag = 'output window, operand 2']
    %12 = vsyncpa [#allocation3], 0
    %s13 = scalar_lea.sflag [#allocation3], 1
    %14 = vsyncpa %s13, 0
    %15 = vsyncpa [#allocation6], 0
    %16 = vsyncpa [#allocation4], 0
    %s17 = scalar_lea.sflag [#allocation4], 1
    %18 = vsyncpa %s17, 0
    %19 = vsyncpa [#allocation10], 0
    %s20 = scalar_lea.sflag [#allocation10], 1
    %21 = vsyncpa %s20, 0
    loop: start=0, step=1, limit=4
    $region2: #{tpu_custom_call.1} parent=1 // loop_pre_header
      _
    $region3: #{tpu_custom_call.1} parent=1 // loop_header
      %s23 = sphi 0, %s27
      %p24 = scmp.ge.s32.totalorder %s23, 4
      %s30 = sphi 0, %s42
      %s31 = sphi 0, %s38
      %s32 = sphi 0, %s30
      %s33 = sphi 0, %s31
      %s34 = sphi 0, %s32
      %s35 = sphi 0, %s33
      %s47 = sphi 0, %s49
      %s50 = sphi 0, %s47
      %s51 = sphi 0, %s50
      %s67 = sphi 0, %s51
      %s71 = sphi 0, %s71
      %s73 = sphi 0, %s71
      %s74 = sphi 0, %s73
      %s88 = sphi 0, %s74
      %s94 = sphi 0, %s96
      %s97 = sphi 0, %s94
      %s98 = sphi 0, %s97
      %s114 = sphi 0, %s98
      %s120 = sphi 0, %s122
      %s123 = sphi 0, %s120
      %s124 = sphi 0, %s123
      %s140 = sphi 0, %s124
      %s148 = sphi 0, %s150
      %s151 = sphi 0, %s148
      %s152 = sphi 0, %s151
      %s168 = sphi 0, %s152
      %s176 = sphi 0, %s178
      %s179 = sphi 0, %s176
      %s180 = sphi 0, %s179
      %s196 = sphi 0, %s180
      %s204 = sphi 0, %s206
      %s207 = sphi 0, %s204
      %s208 = sphi 0, %s207
      %s224 = sphi 0, %s208
    $region4: #{tpu_custom_call.1} parent=1 // loop_header_branch
      %26 = sbr.rel (%p24) target = $region8
    $region5: #{tpu_custom_call.1} parent=1 // loop_body
      %s28 = ssub.s32 %s23, 1
      %s29 = ssub.s32 %s23, 2
      %s36 = sadd.s32 1, %s31
      %p37 = scmp.ge.s32.totalorder %s36, 2
      %s38 = scalar_select %p37, 0, %s36
      %s39 = sadd.s32 1, %s30
      %s40 = scalar_select %p37, %s39, %s30
      %p41 = scmp.ge.s32.totalorder %s40, 1
      %s42 = scalar_select %p41, 0, %s40
      %s43 = ssub.s32 %s31, %s38
      %s44 = ssub.s32 %s30, %s42
      %s45 = sor.u32 %s43, %s44
      %p46 = scmp.eq.s32.totalorder %s45, 0
      %s48 = sadd.s32 %s47, 1
      %s49 = scalar_select %p46, %s47, %s48
      %p52 = pneg %p46
      %p53 = scmp.eq.s32.totalorder %s23, 1
      %p54 = por %p52, %p53
      %p55 = scmp.ne.s32.totalorder %s47, %s50
      %p56 = scmp.eq.s32.totalorder %s23, 0
      %p57 = por %p55, %p56
      %p58 = scmp.ne.s32.totalorder %s47, %s50
      %p59 = scmp.eq.s32.totalorder %s28, 1
      %p60 = por %p58, %p59
      %p61 = scmp.ne.s32.totalorder %s50, %s51
      %p62 = scmp.eq.s32.totalorder %s28, 0
      %p63 = por %p61, %p62
      %p64 = scmp.ne.s32.totalorder %s50, %s51
      %p65 = scmp.eq.s32.totalorder %s29, 1
      %p66 = por %p64, %p65
      %p68 = scmp.ne.s32.totalorder %s51, %s67
      %p69 = scmp.eq.s32.totalorder %s29, 0
      %p70 = por %p68, %p69
      %s72 = sadd.s32 %s71, 1
      %p75 = scmp.eq.s32.totalorder %s23, 1
      %p76 = scmp.ne.s32.totalorder %s71, %s73
      %p77 = scmp.eq.s32.totalorder %s23, 0
      %p78 = por %p76, %p77
      %p79 = scmp.ne.s32.totalorder %s71, %s73
      %p80 = scmp.eq.s32.totalorder %s28, 1
      %p81 = por %p79, %p80
      %p82 = scmp.ne.s32.totalorder %s73, %s74
      %p83 = scmp.eq.s32.totalorder %s28, 0
      %p84 = por %p82, %p83
      %p85 = scmp.ne.s32.totalorder %s73, %s74
      %p86 = scmp.eq.s32.totalorder %s29, 1
      %p87 = por %p85, %p86
      %p89 = scmp.ne.s32.totalorder %s74, %s88
      %p90 = scmp.eq.s32.totalorder %s29, 0
      %p91 = por %p89, %p90
      %s92 = ssub.s32 %s30, %s42
      %p93 = scmp.eq.s32.totalorder %s92, 0
      %s95 = sadd.s32 %s94, 1
      %s96 = scalar_select %p93, %s94, %s95
      %p99 = pneg %p93
      %p100 = scmp.eq.s32.totalorder %s23, 1
      %p101 = por %p99, %p100
      %p102 = scmp.ne.s32.totalorder %s94, %s97
      %p103 = scmp.eq.s32.totalorder %s23, 0
      %p104 = por %p102, %p103
      %p105 = scmp.ne.s32.totalorder %s94, %s97
      %p106 = scmp.eq.s32.totalorder %s28, 1
      %p107 = por %p105, %p106
      %p108 = scmp.ne.s32.totalorder %s97, %s98
      %p109 = scmp.eq.s32.totalorder %s28, 0
      %p110 = por %p108, %p109
      %p111 = scmp.ne.s32.totalorder %s97, %s98
      %p112 = scmp.eq.s32.totalorder %s29, 1
      %p113 = por %p111, %p112
      %p115 = scmp.ne.s32.totalorder %s98, %s114
      %p116 = scmp.eq.s32.totalorder %s29, 0
      %p117 = por %p115, %p116
      %s118 = ssub.s32 %s30, %s42
      %p119 = scmp.eq.s32.totalorder %s118, 0
      %s121 = sadd.s32 %s120, 1
      %s122 = scalar_select %p119, %s120, %s121
      %p125 = pneg %p119
      %p126 = scmp.eq.s32.totalorder %s23, 1
      %p127 = por %p125, %p126
      %p128 = scmp.ne.s32.totalorder %s120, %s123
      %p129 = scmp.eq.s32.totalorder %s23, 0
      %p130 = por %p128, %p129
      %p131 = scmp.ne.s32.totalorder %s120, %s123
      %p132 = scmp.eq.s32.totalorder %s28, 1
      %p133 = por %p131, %p132
      %p134 = scmp.ne.s32.totalorder %s123, %s124
      %p135 = scmp.eq.s32.totalorder %s28, 0
      %p136 = por %p134, %p135
      %p137 = scmp.ne.s32.totalorder %s123, %s124
      %p138 = scmp.eq.s32.totalorder %s29, 1
      %p139 = por %p137, %p138
      %p141 = scmp.ne.s32.totalorder %s124, %s140
      %p142 = scmp.eq.s32.totalorder %s29, 0
      %p143 = por %p141, %p142
      %s144 = ssub.s32 %s31, %s38
      %s145 = ssub.s32 %s30, %s42
      %s146 = sor.u32 %s144, %s145
      %p147 = scmp.eq.s32.totalorder %s146, 0
      %s149 = sadd.s32 %s148, 1
      %s150 = scalar_select %p147, %s148, %s149
      %p153 = pneg %p147
      %p154 = scmp.eq.s32.totalorder %s23, 1
      %p155 = por %p153, %p154
      %p156 = scmp.ne.s32.totalorder %s148, %s151
      %p157 = scmp.eq.s32.totalorder %s23, 0
      %p158 = por %p156, %p157
      %p159 = scmp.ne.s32.totalorder %s148, %s151
      %p160 = scmp.eq.s32.totalorder %s28, 1
      %p161 = por %p159, %p160
      %p162 = scmp.ne.s32.totalorder %s151, %s152
      %p163 = scmp.eq.s32.totalorder %s28, 0
      %p164 = por %p162, %p163
      %p165 = scmp.ne.s32.totalorder %s151, %s152
      %p166 = scmp.eq.s32.totalorder %s29, 1
      %p167 = por %p165, %p166
      %p169 = scmp.ne.s32.totalorder %s152, %s168
      %p170 = scmp.eq.s32.totalorder %s29, 0
      %p171 = por %p169, %p170
      %s172 = ssub.s32 %s31, %s38
      %s173 = ssub.s32 %s30, %s42
      %s174 = sor.u32 %s172, %s173
      %p175 = scmp.eq.s32.totalorder %s174, 0
      %s177 = sadd.s32 %s176, 1
      %s178 = scalar_select %p175, %s176, %s177
      %p181 = pneg %p175
      %p182 = scmp.eq.s32.totalorder %s23, 1
      %p183 = por %p181, %p182
      %p184 = scmp.ne.s32.totalorder %s176, %s179
      %p185 = scmp.eq.s32.totalorder %s23, 0
      %p186 = por %p184, %p185
      %p187 = scmp.ne.s32.totalorder %s176, %s179
      %p188 = scmp.eq.s32.totalorder %s28, 1
      %p189 = por %p187, %p188
      %p190 = scmp.ne.s32.totalorder %s179, %s180
      %p191 = scmp.eq.s32.totalorder %s28, 0
      %p192 = por %p190, %p191
      %p193 = scmp.ne.s32.totalorder %s179, %s180
      %p194 = scmp.eq.s32.totalorder %s29, 1
      %p195 = por %p193, %p194
      %p197 = scmp.ne.s32.totalorder %s180, %s196
      %p198 = scmp.eq.s32.totalorder %s29, 0
      %p199 = por %p197, %p198
      %s200 = ssub.s32 %s31, %s38
      %s201 = ssub.s32 %s30, %s42
      %s202 = sor.u32 %s200, %s201
      %p203 = scmp.eq.s32.totalorder %s202, 0
      %s205 = sadd.s32 %s204, 1
      %s206 = scalar_select %p203, %s204, %s205
      %p209 = pneg %p203
      %p210 = scmp.eq.s32.totalorder %s23, 1
      %p211 = por %p209, %p210
      %p212 = scmp.ne.s32.totalorder %s204, %s207
      %p213 = scmp.eq.s32.totalorder %s23, 0
      %p214 = por %p212, %p213
      %p215 = scmp.ne.s32.totalorder %s204, %s207
      %p216 = scmp.eq.s32.totalorder %s28, 1
      %p217 = por %p215, %p216
      %p218 = scmp.ne.s32.totalorder %s207, %s208
      %p219 = scmp.eq.s32.totalorder %s28, 0
      %p220 = por %p218, %p219
      %p221 = scmp.ne.s32.totalorder %s207, %s208
      %p222 = scmp.eq.s32.totalorder %s29, 1
      %p223 = por %p221, %p222
      %p225 = scmp.ne.s32.totalorder %s208, %s224
      %p226 = scmp.eq.s32.totalorder %s29, 0
      %p227 = por %p225, %p226
      %p228 = scmp.le.s32.totalorder 1, %s23
      %p229 = scmp.lt.s32.totalorder %s23, 3
      %p230 = pnand %p228, %p229
      %p231 = pneg %p230
      // Predicated region
      $region9: #{tpu_custom_call.1} parent=5 // pred_check
        _
      $region10: #{tpu_custom_call.1} parent=5 // pred_check_branch
        %233 = sbr.rel (%p230) target = $region12
      $region11: #{tpu_custom_call.1} parent=5 // pred_region
        %s234 = ssub.s32 %s23, 1
        // Predicated region
        $region13: #{tpu_custom_call.1} parent=11 // pred_check
          %p235 = pneg %p84
        $region14: #{tpu_custom_call.1} parent=11 // pred_check_branch
          %237 = sbr.rel (%p235) target = $region16
        $region15: #{tpu_custom_call.1} parent=11 // pred_region
          %s239 = ssub.s32 10240, 10240
          %240 = vsyncadd [#allocation6], %s239
          %s241 = sshll.u32 [#allocation5], 4
          %s242 = int_to_ptr.vmem [resolvable:$true] %s241
          %247 = dma.hbm_to_vmem [thread:$0]  %s1, 10240, %s242, [#allocation6], 640, 640, 40
        $region16: #{tpu_custom_call.1} parent=11 // pred_fallthru
          _
        // Predicated region
        $region17: #{tpu_custom_call.1} parent=11 // pred_check
          %p248 = pneg %p110
        $region18: #{tpu_custom_call.1} parent=11 // pred_check_branch
          %250 = sbr.rel (%p248) target = $region20
        $region19: #{tpu_custom_call.1} parent=11 // pred_region
          %s252 = ssub.s32 128, 128
          %253 = vsyncadd [#allocation6], %s252
          %s254 = smul.addr %s32, 128
          %s255 = scalar_lea.hbm %s2, %s254
          %s257 = sshll.u32 [#allocation7], 4
          %s258 = int_to_ptr.vmem [resolvable:$true] %s257
          %260 = dma.hbm_to_vmem [thread:$0]  %s255, 128, %s258, [#allocation6]
        $region20: #{tpu_custom_call.1} parent=11 // pred_fallthru
          _
        // Predicated region
        $region21: #{tpu_custom_call.1} parent=11 // pred_check
          %p261 = pneg %p136
        $region22: #{tpu_custom_call.1} parent=11 // pred_check_branch
          %263 = sbr.rel (%p261) target = $region24
        $region23: #{tpu_custom_call.1} parent=11 // pred_region
          %p264 = scmp.lt.s32.totalorder %s32, 0
          %s265 = scalar_select %p264, %s32, 0
          %s266 = smul.addr %s265, 8
          %s267 = scalar_lea.vmem %s3, %s266
        $region24: #{tpu_custom_call.1} parent=11 // pred_fallthru
          _
      $region12: #{tpu_custom_call.1} parent=5 // pred_fallthru
        _
      %p268 = scmp.lt.s32.totalorder %s23, 2
      // Predicated region
      $region25: #{tpu_custom_call.1} parent=5 // pred_check
        %p269 = pneg %p268
      $region26: #{tpu_custom_call.1} parent=5 // pred_check_branch
        %271 = sbr.rel (%p269) target = $region28
      $region27: #{tpu_custom_call.1} parent=5 // pred_region
        // Predicated region
        $region29: #{tpu_custom_call.1} parent=27 // pred_check
          %p272 = pneg %p57
        $region30: #{tpu_custom_call.1} parent=27 // pred_check_branch
          %274 = sbr.rel (%p272) target = $region32
        $region31: #{tpu_custom_call.1} parent=27 // pred_region
          %s275 = sand.u32 %s47, 1
          %s276 = scalar_lea.sflag [#allocation3], %s275
          %s277 = sand.u32 %s47, 1
          %s278 = smul.addr %s277, 8
          %s279 = scalar_lea.vmem [#allocation2], %s278
          %s281 = ssub.s32 128, 128
          %282 = vsyncadd %s276, %s281
          %s283 = sadd.s32 %s30, %s31
          %s284 = smul.addr %s283, 128
          %s285 = scalar_lea.hbm %s0, %s284
          %s287 = sshll.u32 %s279, 4
          %s288 = int_to_ptr.vmem [resolvable:$true] %s287
          %290 = dma.hbm_to_vmem [thread:$0]  %s285, 128, %s288, %s276
        $region32: #{tpu_custom_call.1} parent=27 // pred_fallthru
          _
      $region28: #{tpu_custom_call.1} parent=5 // pred_fallthru
        _
      %p291 = scmp.le.s32.totalorder 1, %s23
      %p292 = scmp.lt.s32.totalorder %s23, 3
      %p293 = pnand %p291, %p292
      %p294 = pneg %p293
      // Predicated region
      $region33: #{tpu_custom_call.1} parent=5 // pred_check
        _
      $region34: #{tpu_custom_call.1} parent=5 // pred_check_branch
        %296 = sbr.rel (%p293) target = $region36
      $region35: #{tpu_custom_call.1} parent=5 // pred_region
        %s297 = ssub.s32 %s23, 1
        %s298 = sand.u32 %s50, 1
        %s299 = scalar_lea.sflag [#allocation3], %s298
        %s300 = sand.u32 %s50, 1
        %s301 = smul.addr %s300, 8
        %s302 = scalar_lea.vmem [#allocation2], %s301
        // Predicated region
        $region37: #{tpu_custom_call.1} parent=35 // pred_check
          %p303 = pneg %p63
        $region38: #{tpu_custom_call.1} parent=35 // pred_check_branch
          %305 = sbr.rel (%p303) target = $region40
        $region39: #{tpu_custom_call.1} parent=35 // pred_region
          %306 = dma.done %s299, 128
        $region40: #{tpu_custom_call.1} parent=35 // pred_fallthru
          _
        // Predicated region
        $region41: #{tpu_custom_call.1} parent=35 // pred_check
          %p307 = pneg %p84
        $region42: #{tpu_custom_call.1} parent=35 // pred_check_branch
          %309 = sbr.rel (%p307) target = $region44
        $region43: #{tpu_custom_call.1} parent=35 // pred_region
          %310 = dma.done [#allocation6], 10240
        $region44: #{tpu_custom_call.1} parent=35 // pred_fallthru
          _
        // Predicated region
        $region45: #{tpu_custom_call.1} parent=35 // pred_check
          %p311 = pneg %p110
        $region46: #{tpu_custom_call.1} parent=35 // pred_check_branch
          %313 = sbr.rel (%p311) target = $region48
        $region47: #{tpu_custom_call.1} parent=35 // pred_region
          %314 = dma.done [#allocation6], 128
        $region48: #{tpu_custom_call.1} parent=35 // pred_fallthru
          _
        %s315 = sand.u32 %s50, 1
        %s316 = scalar_lea.sflag [#allocation3], %s315
        %s317 = sand.u32 %s50, 1
        %s318 = smul.addr %s317, 8
        %s319 = scalar_lea.vmem [#allocation2], %s318
        %p320 = pneg %p63
        %p321 = pneg %p60
        %p322 = pneg %p84
        %p323 = pneg %p81
        %p324 = pneg %p110
        %p325 = pneg %p107
        %p326 = scmp.lt.s32.totalorder %s32, 0
        %s327 = scalar_select %p326, %s32, 0
        %s328 = smul.addr %s327, 8
        %s329 = scalar_lea.vmem %s3, %s328
        %p330 = pneg %p136
        %p331 = pneg %p133
        %p332 = pneg %p164
        %p333 = pneg %p161
        %s334 = sand.u32 %s151, 1
        %s335 = scalar_lea.sflag [#allocation4], %s334
        %s336 = sand.u32 %s151, 1
        %s337 = smul.addr %s336, 8
        %s338 = scalar_lea.vmem [#allocation8], %s337
        %p339 = pneg %p192
        %p340 = pneg %p189
        %s341 = sand.u32 %s28, 1
        %s342 = scalar_lea.sflag [#allocation10], %s341
        %s343 = sand.u32 %s179, 1
        %s344 = smul.addr %s343, 8
        %s345 = scalar_lea.vmem [#allocation9], %s344
        %p346 = pneg %p220
        %p347 = pneg %p217
        %s348 = sand.u32 %s28, 1
        %s349 = scalar_lea.sflag [#allocation10], %s348
        %s350 = sand.u32 %s207, 1
        %s351 = smul.addr %s350, 8
        %s352 = scalar_lea.vmem [#allocation11], %s351
        %p353 = scmp.lt.s32.totalorder %s32, 0
        %s354 = scalar_select %p353, %s32, 0
        %s355 = smul.addr %s354, 8
        %s356 = scalar_lea.vmem %s3, %s355
        %v357 = vld [vmem:[%s302] sm:$0xff]
        %v358 = vld [vmem:[#allocation5] sm:$0xff]
        %v359 = vld [vmem:[#allocation5 + $0x8] sm:$0xff]
        %v360 = vld [vmem:[#allocation5 + $0x10] sm:$0xff]
        %v361 = vld [vmem:[#allocation5 + $0x18] sm:$0xff]
        %v362 = vld [vmem:[#allocation5 + $0x20] sm:$0xff]
        %v363 = vld [vmem:[#allocation5 + $0x28] sm:$0xff]
        %v364 = vld [vmem:[#allocation5 + $0x30] sm:$0xff]
        %v365 = vld [vmem:[#allocation5 + $0x38] sm:$0xff]
        %v366 = vld [vmem:[#allocation5 + $0x40] sm:$0xff]
        %v367 = vld [vmem:[#allocation5 + $0x48] sm:$0xff]
        %v368 = vld [vmem:[#allocation5 + $0x50] sm:$0xff]
        %v369 = vld [vmem:[#allocation5 + $0x58] sm:$0xff]
        %v370 = vld [vmem:[#allocation5 + $0x60] sm:$0xff]
        %v371 = vld [vmem:[#allocation5 + $0x68] sm:$0xff]
        %v372 = vld [vmem:[#allocation5 + $0x70] sm:$0xff]
        %v373 = vld [vmem:[#allocation5 + $0x78] sm:$0xff]
        %v374 = vld [vmem:[#allocation5 + $0x80] sm:$0xff]
        %v375 = vld [vmem:[#allocation5 + $0x88] sm:$0xff]
        %v376 = vld [vmem:[#allocation5 + $0x90] sm:$0xff]
        %v377 = vld [vmem:[#allocation5 + $0x98] sm:$0xff]
        %v378 = vld [vmem:[#allocation5 + $0xa0] sm:$0xff]
        %v379 = vld [vmem:[#allocation5 + $0xa8] sm:$0xff]
        %v380 = vld [vmem:[#allocation5 + $0xb0] sm:$0xff]
        %v381 = vld [vmem:[#allocation5 + $0xb8] sm:$0xff]
        %v382 = vld [vmem:[#allocation5 + $0xc0] sm:$0xff]
        %v383 = vld [vmem:[#allocation5 + $0xc8] sm:$0xff]
        %v384 = vld [vmem:[#allocation5 + $0xd0] sm:$0xff]
        %v385 = vld [vmem:[#allocation5 + $0xd8] sm:$0xff]
        %v386 = vld [vmem:[#allocation5 + $0xe0] sm:$0xff]
        %v387 = vld [vmem:[#allocation5 + $0xe8] sm:$0xff]
        %v388 = vld [vmem:[#allocation5 + $0xf0] sm:$0xff]
        %v389 = vld [vmem:[#allocation5 + $0xf8] sm:$0xff]
        %v390 = vld [vmem:[#allocation5 + $0x100] sm:$0xff]
        %v391 = vld [vmem:[#allocation5 + $0x108] sm:$0xff]
        %v392 = vld [vmem:[#allocation5 + $0x110] sm:$0xff]
        %v393 = vld [vmem:[#allocation5 + $0x118] sm:$0xff]
        %v394 = vld [vmem:[#allocation5 + $0x120] sm:$0xff]
        %v395 = vld [vmem:[#allocation5 + $0x128] sm:$0xff]
        %v396 = vld [vmem:[#allocation5 + $0x130] sm:$0xff]
        %v397 = vld [vmem:[#allocation5 + $0x138] sm:$0xff]
        %v398 = vld [vmem:[#allocation5 + $0x140] sm:$0xff]
        %v399 = vld [vmem:[#allocation5 + $0x148] sm:$0xff]
        %v400 = vld [vmem:[#allocation5 + $0x150] sm:$0xff]
        %v401 = vld [vmem:[#allocation5 + $0x158] sm:$0xff]
        %v402 = vld [vmem:[#allocation5 + $0x160] sm:$0xff]
        %v403 = vld [vmem:[#allocation5 + $0x168] sm:$0xff]
        %v404 = vld [vmem:[#allocation5 + $0x170] sm:$0xff]
        %v405 = vld [vmem:[#allocation5 + $0x178] sm:$0xff]
        %v406 = vld [vmem:[#allocation5 + $0x180] sm:$0xff]
        %v407 = vld [vmem:[#allocation5 + $0x188] sm:$0xff]
        %v408 = vld [vmem:[#allocation5 + $0x190] sm:$0xff]
        %v409 = vld [vmem:[#allocation5 + $0x198] sm:$0xff]
        %v410 = vld [vmem:[#allocation5 + $0x1a0] sm:$0xff]
        %v411 = vld [vmem:[#allocation5 + $0x1a8] sm:$0xff]
        %v412 = vld [vmem:[#allocation5 + $0x1b0] sm:$0xff]
        %v413 = vld [vmem:[#allocation5 + $0x1b8] sm:$0xff]
        %v414 = vld [vmem:[#allocation5 + $0x1c0] sm:$0xff]
        %v415 = vld [vmem:[#allocation5 + $0x1c8] sm:$0xff]
        %v416 = vld [vmem:[#allocation5 + $0x1d0] sm:$0xff]
        %v417 = vld [vmem:[#allocation5 + $0x1d8] sm:$0xff]
        %v418 = vld [vmem:[#allocation5 + $0x1e0] sm:$0xff]
        %v419 = vld [vmem:[#allocation5 + $0x1e8] sm:$0xff]
        %v420 = vld [vmem:[#allocation5 + $0x1f0] sm:$0xff]
        %v421 = vld [vmem:[#allocation5 + $0x1f8] sm:$0xff]
        %v422 = vld [vmem:[#allocation5 + $0x200] sm:$0xff]
        %v423 = vld [vmem:[#allocation5 + $0x208] sm:$0xff]
        %v424 = vld [vmem:[#allocation5 + $0x210] sm:$0xff]
        %v425 = vld [vmem:[#allocation5 + $0x218] sm:$0xff]
        %v426 = vld [vmem:[#allocation5 + $0x220] sm:$0xff]
        %v427 = vld [vmem:[#allocation5 + $0x228] sm:$0xff]
        %v428 = vld [vmem:[#allocation5 + $0x230] sm:$0xff]
        %v429 = vld [vmem:[#allocation5 + $0x238] sm:$0xff]
        %v430 = vld [vmem:[#allocation5 + $0x240] sm:$0xff]
        %v431 = vld [vmem:[#allocation5 + $0x248] sm:$0xff]
        %v432 = vld [vmem:[#allocation5 + $0x250] sm:$0xff]
        %v433 = vld [vmem:[#allocation5 + $0x258] sm:$0xff]
        %v434 = vld [vmem:[#allocation5 + $0x260] sm:$0xff]
        %v435 = vld [vmem:[#allocation5 + $0x268] sm:$0xff]
        %v436 = vld [vmem:[#allocation5 + $0x270] sm:$0xff]
        %v437 = vld [vmem:[#allocation5 + $0x278] sm:$0xff]
        %438 = vmatprep.subr.mxu0 %v359
        %439 = vmatpush1.msra.mxu0 %v358
        %440 = vmatprep.subr.mxu0 %v364
        %441 = vmatpush1.msra.mxu0 %v363
        %442 = vmatprep.subr.mxu0 %v369
        %443 = vmatpush1.msra.mxu0 %v368
        %444 = vmatprep.subr.mxu0 %v374
        %445 = vmatpush1.msra.mxu0 %v373
        %446 = vmatprep.subr.mxu0 %v379
        %447 = vmatpush1.msra.mxu0 %v378
        %448 = vmatprep.subr.mxu0 %v384
        %449 = vmatpush1.msra.mxu0 %v383
        %450 = vmatprep.subr.mxu0 %v389
        %451 = vmatpush1.msra.mxu0 %v388
        %452 = vmatprep.subr.mxu0 %v394
        %453 = vmatpush1.msra.mxu0 %v393
        %454 = vmatprep.subr.mxu0 %v399
        %455 = vmatpush1.msra.mxu0 %v398
        %456 = vmatprep.subr.mxu0 %v404
        %457 = vmatpush1.msra.mxu0 %v403
        %458 = vmatprep.subr.mxu0 %v409
        %459 = vmatpush1.msra.mxu0 %v408
        %460 = vmatprep.subr.mxu0 %v414
        %461 = vmatpush1.msra.mxu0 %v413
        %462 = vmatprep.subr.mxu0 %v419
        %463 = vmatpush1.msra.mxu0 %v418
        %464 = vmatprep.subr.mxu0 %v424
        %465 = vmatpush1.msra.mxu0 %v423
        %466 = vmatprep.subr.mxu0 %v429
        %467 = vmatpush1.msra.mxu0 %v428
        %468 = vmatprep.subr.mxu0 %v434
        %469 = vmatpush1.msra.mxu0 %v433
        %470 = vmatprep.subr.mxu0 0.0
        %471 = vmatpush1.msra.mxu0 0.0
        %472 = vmatprep.subr.mxu0 0.0
        %473 = vmatpush1.msra.mxu0 0.0
        %474 = vmatprep.subr.mxu0 0.0
        %475 = vmatpush1.msra.mxu0 0.0
        %476 = vmatprep.subr.mxu0 0.0
        %477 = vmatpush1.msra.mxu0 0.0
        %478 = vmatprep.subr.mxu0 0.0
        %479 = vmatpush1.msra.mxu0 0.0
        %480 = vmatprep.subr.mxu0 0.0
        %481 = vmatpush1.msra.mxu0 0.0
        %482 = vmatprep.subr.mxu0 0.0
        %483 = vmatpush1.msra.mxu0 0.0
        %484 = vmatprep.subr.mxu0 0.0
        %485 = vmatpush1.msra.mxu0 0.0
        %486 = vmatprep.subr.mxu0 0.0
        %487 = vmatpush1.msra.mxu0 0.0
        %488 = vmatprep.subr.mxu0 0.0
        %489 = vmatpush1.msra.mxu0 0.0
        %490 = vmatprep.subr.mxu0 0.0
        %491 = vmatpush1.msra.mxu0 0.0
        %492 = vmatprep.subr.mxu0 0.0
        %493 = vmatpush1.msra.mxu0 0.0
        %494 = vmatprep.subr.mxu0 0.0
        %495 = vmatpush1.msra.mxu0 0.0
        %496 = vmatprep.subr.mxu0 0.0
        %497 = vmatpush1.msra.mxu0 0.0
        %498 = vmatprep.subr.mxu0 0.0
        %499 = vmatpush1.msra.mxu0 0.0
        %500 = vmatprep.subr.mxu0 0.0
        %501 = vmatpush1.msra.mxu0 0.0
        %502 = vmatprep.mubr.f32.mxu0 0.0
        %503 = vmatmul.mubr.f32.gmra.mrb[0].mxu0 %v357
        %v504 = vpop.f32.mrb[0].mxu0
        %v505 = vadd.f32 0.0, %v504
        %v506 = vpop.f32.mrb[0].mxu0
        %v507 = vadd.f32 0.0, %v506
        %508 = vdwg.mxu0
        %509 = vmatprep.subr.mxu0 %v361
        %510 = vmatpush1.msra.mxu0 %v360
        %511 = vmatprep.subr.mxu0 %v366
        %512 = vmatpush1.msra.mxu0 %v365
        %513 = vmatprep.subr.mxu0 %v371
        %514 = vmatpush1.msra.mxu0 %v370
        %515 = vmatprep.subr.mxu0 %v376
        %516 = vmatpush1.msra.mxu0 %v375
        %517 = vmatprep.subr.mxu0 %v381
        %518 = vmatpush1.msra.mxu0 %v380
        %519 = vmatprep.subr.mxu0 %v386
        %520 = vmatpush1.msra.mxu0 %v385
        %521 = vmatprep.subr.mxu0 %v391
        %522 = vmatpush1.msra.mxu0 %v390
        %523 = vmatprep.subr.mxu0 %v396
        %524 = vmatpush1.msra.mxu0 %v395
        %525 = vmatprep.subr.mxu0 %v401
        %526 = vmatpush1.msra.mxu0 %v400
        %527 = vmatprep.subr.mxu0 %v406
        %528 = vmatpush1.msra.mxu0 %v405
        %529 = vmatprep.subr.mxu0 %v411
        %530 = vmatpush1.msra.mxu0 %v410
        %531 = vmatprep.subr.mxu0 %v416
        %532 = vmatpush1.msra.mxu0 %v415
        %533 = vmatprep.subr.mxu0 %v421
        %534 = vmatpush1.msra.mxu0 %v420
        %535 = vmatprep.subr.mxu0 %v426
        %536 = vmatpush1.msra.mxu0 %v425
        %537 = vmatprep.subr.mxu0 %v431
        %538 = vmatpush1.msra.mxu0 %v430
        %539 = vmatprep.subr.mxu0 %v436
        %540 = vmatpush1.msra.mxu0 %v435
        %541 = vmatprep.subr.mxu0 0.0
        %542 = vmatpush1.msra.mxu0 0.0
        %543 = vmatprep.subr.mxu0 0.0
        %544 = vmatpush1.msra.mxu0 0.0
        %545 = vmatprep.subr.mxu0 0.0
        %546 = vmatpush1.msra.mxu0 0.0
        %547 = vmatprep.subr.mxu0 0.0
        %548 = vmatpush1.msra.mxu0 0.0
        %549 = vmatprep.subr.mxu0 0.0
        %550 = vmatpush1.msra.mxu0 0.0
        %551 = vmatprep.subr.mxu0 0.0
        %552 = vmatpush1.msra.mxu0 0.0
        %553 = vmatprep.subr.mxu0 0.0
        %554 = vmatpush1.msra.mxu0 0.0
        %555 = vmatprep.subr.mxu0 0.0
        %556 = vmatpush1.msra.mxu0 0.0
        %557 = vmatprep.subr.mxu0 0.0
        %558 = vmatpush1.msra.mxu0 0.0
        %559 = vmatprep.subr.mxu0 0.0
        %560 = vmatpush1.msra.mxu0 0.0
        %561 = vmatprep.subr.mxu0 0.0
        %562 = vmatpush1.msra.mxu0 0.0
        %563 = vmatprep.subr.mxu0 0.0
        %564 = vmatpush1.msra.mxu0 0.0
        %565 = vmatprep.subr.mxu0 0.0
        %566 = vmatpush1.msra.mxu0 0.0
        %567 = vmatprep.subr.mxu0 0.0
        %568 = vmatpush1.msra.mxu0 0.0
        %569 = vmatprep.subr.mxu0 0.0
        %570 = vmatpush1.msra.mxu0 0.0
        %571 = vmatprep.subr.mxu0 0.0
        %572 = vmatpush1.msra.mxu0 0.0
        %573 = vmatprep.mubr.f32.mxu0 0.0
        %574 = vmatmul.mubr.f32.gmra.mrb[0].mxu0 %v357
        %v575 = vpop.f32.mrb[0].mxu0
        %v576 = vadd.f32 0.0, %v575
        %v577 = vpop.f32.mrb[0].mxu0
        %v578 = vadd.f32 0.0, %v577
        %579 = vdwg.mxu0
        %580 = vmatprep.subr.mxu0 0.0
        %581 = vmatpush1.msra.mxu0 %v362
        %582 = vmatprep.subr.mxu0 0.0
        %583 = vmatpush1.msra.mxu0 %v367
        %584 = vmatprep.subr.mxu0 0.0
        %585 = vmatpush1.msra.mxu0 %v372
        %586 = vmatprep.subr.mxu0 0.0
        %587 = vmatpush1.msra.mxu0 %v377
        %588 = vmatprep.subr.mxu0 0.0
        %589 = vmatpush1.msra.mxu0 %v382
        %590 = vmatprep.subr.mxu0 0.0
        %591 = vmatpush1.msra.mxu0 %v387
        %592 = vmatprep.subr.mxu0 0.0
        %593 = vmatpush1.msra.mxu0 %v392
        %594 = vmatprep.subr.mxu0 0.0
        %595 = vmatpush1.msra.mxu0 %v397
        %596 = vmatprep.subr.mxu0 0.0
        %597 = vmatpush1.msra.mxu0 %v402
        %598 = vmatprep.subr.mxu0 0.0
        %599 = vmatpush1.msra.mxu0 %v407
        %600 = vmatprep.subr.mxu0 0.0
        %601 = vmatpush1.msra.mxu0 %v412
        %602 = vmatprep.subr.mxu0 0.0
        %603 = vmatpush1.msra.mxu0 %v417
        %604 = vmatprep.subr.mxu0 0.0
        %605 = vmatpush1.msra.mxu0 %v422
        %606 = vmatprep.subr.mxu0 0.0
        %607 = vmatpush1.msra.mxu0 %v427
        %608 = vmatprep.subr.mxu0 0.0
        %609 = vmatpush1.msra.mxu0 %v432
        %610 = vmatprep.subr.mxu0 0.0
        %611 = vmatpush1.msra.mxu0 %v437
        %612 = vmatprep.subr.mxu0 0.0
        %613 = vmatpush1.msra.mxu0 0.0
        %614 = vmatprep.subr.mxu0 0.0
        %615 = vmatpush1.msra.mxu0 0.0
        %616 = vmatprep.subr.mxu0 0.0
        %617 = vmatpush1.msra.mxu0 0.0
        %618 = vmatprep.subr.mxu0 0.0
        %619 = vmatpush1.msra.mxu0 0.0
        %620 = vmatprep.subr.mxu0 0.0
        %621 = vmatpush1.msra.mxu0 0.0
        %622 = vmatprep.subr.mxu0 0.0
        %623 = vmatpush1.msra.mxu0 0.0
        %624 = vmatprep.subr.mxu0 0.0
        %625 = vmatpush1.msra.mxu0 0.0
        %626 = vmatprep.subr.mxu0 0.0
        %627 = vmatpush1.msra.mxu0 0.0
        %628 = vmatprep.subr.mxu0 0.0
        %629 = vmatpush1.msra.mxu0 0.0
        %630 = vmatprep.subr.mxu0 0.0
        %631 = vmatpush1.msra.mxu0 0.0
        %632 = vmatprep.subr.mxu0 0.0
        %633 = vmatpush1.msra.mxu0 0.0
        %634 = vmatprep.subr.mxu0 0.0
        %635 = vmatpush1.msra.mxu0 0.0
        %636 = vmatprep.subr.mxu0 0.0
        %637 = vmatpush1.msra.mxu0 0.0
        %638 = vmatprep.subr.mxu0 0.0
        %639 = vmatpush1.msra.mxu0 0.0
        %640 = vmatprep.subr.mxu0 0.0
        %641 = vmatpush1.msra.mxu0 0.0
        %642 = vmatprep.subr.mxu0 0.0
        %643 = vmatpush1.msra.mxu0 0.0
        %644 = vmatprep.mubr.f32.mxu0 0.0
        %645 = vmatmul.mubr.f32.gmra.mrb[0].mxu0 %v357
        %v646 = vpop.f32.mrb[0].mxu0
        %v647 = vadd.f32 0.0, %v646
        %v648 = vpop.f32.mrb[0].mxu0
        %649 = vdwg.mxu0
        %v650 = vld [vmem:[#allocation7] sm:$0xff]
        %v651 = vld [vmem:[%s356] sm:$0xff]
        %v652 = vmul.f32 %v505, %v650
        %v653 = vmul.f32 %v578, %v651
        %v654 = vadd.f32 %v652, %v653
        %655 = vst [vmem:[%s338] sm:$0xff] %v654
        %v656 = vmul.f32 %v507, %v650
        %v657 = vmul.f32 %v647, %v651
        %v658 = vadd.f32 %v656, %v657
        %659 = vst [vmem:[%s345] sm:$0xff] %v658
        %660 = vst [vmem:[%s352] sm:$0xff] %v576
        %s661 = sand.u32 %s151, 1
        %s662 = scalar_lea.sflag [#allocation4], %s661
        %s663 = sand.u32 %s151, 1
        %s664 = smul.addr %s663, 8
        %s665 = scalar_lea.vmem [#allocation8], %s664
        %s666 = sand.u32 %s28, 1
        %s667 = scalar_lea.sflag [#allocation10], %s666
        %s668 = sand.u32 %s179, 1
        %s669 = smul.addr %s668, 8
        %s670 = scalar_lea.vmem [#allocation9], %s669
        %s671 = sand.u32 %s28, 1
        %s672 = scalar_lea.sflag [#allocation10], %s671
        %s673 = sand.u32 %s207, 1
        %s674 = smul.addr %s673, 8
        %s675 = scalar_lea.vmem [#allocation11], %s674
        // Predicated region
        $region49: #{tpu_custom_call.1} parent=35 // pred_check
          %p676 = pneg %p161
        $region50: #{tpu_custom_call.1} parent=35 // pred_check_branch
          %678 = sbr.rel (%p676) target = $region52
        $region51: #{tpu_custom_call.1} parent=35 // pred_region
          %s680 = ssub.s32 128, 128
          %681 = vsyncadd %s662, %s680
          %s682 = sadd.s32 %s32, %s33
          %s683 = smul.addr %s682, 128
          %s684 = scalar_lea.hbm %s4, %s683
          %s686 = sshll.u32 %s665, 4
          %s687 = int_to_ptr.vmem [resolvable:$true] %s686
          %689 = dma.vmem_to_hbm [thread:$0]  %s687, 128, %s684, %s662
        $region52: #{tpu_custom_call.1} parent=35 // pred_fallthru
          _
        // Predicated region
        $region53: #{tpu_custom_call.1} parent=35 // pred_check
          %p690 = pneg %p189
        $region54: #{tpu_custom_call.1} parent=35 // pred_check_branch
          %692 = sbr.rel (%p690) target = $region56
        $region55: #{tpu_custom_call.1} parent=35 // pred_region
          %s694 = ssub.s32 128, 128
          %695 = vsyncadd %s667, %s694
          %s696 = sadd.s32 %s32, %s33
          %s697 = smul.addr %s696, 128
          %s698 = scalar_lea.hbm %s5, %s697
          %s700 = sshll.u32 %s670, 4
          %s701 = int_to_ptr.vmem [resolvable:$true] %s700
          %703 = dma.vmem_to_hbm [thread:$0]  %s701, 128, %s698, %s667
        $region56: #{tpu_custom_call.1} parent=35 // pred_fallthru
          _
        // Predicated region
        $region57: #{tpu_custom_call.1} parent=35 // pred_check
          %p704 = pneg %p217
        $region58: #{tpu_custom_call.1} parent=35 // pred_check_branch
          %706 = sbr.rel (%p704) target = $region60
        $region59: #{tpu_custom_call.1} parent=35 // pred_region
          %s708 = ssub.s32 128, 128
          %709 = vsyncadd %s672, %s708
          %s710 = sadd.s32 %s32, %s33
          %s711 = smul.addr %s710, 128
          %s712 = scalar_lea.hbm %s6, %s711
          %s714 = sshll.u32 %s675, 4
          %s715 = int_to_ptr.vmem [resolvable:$true] %s714
          %717 = dma.vmem_to_hbm [thread:$0]  %s715, 128, %s712, %s672
        $region60: #{tpu_custom_call.1} parent=35 // pred_fallthru
          _
      $region36: #{tpu_custom_call.1} parent=5 // pred_fallthru
        _
      %p718 = scmp.le.s32.totalorder 2, %s23
      // Predicated region
      $region61: #{tpu_custom_call.1} parent=5 // pred_check
        %p719 = pneg %p718
      $region62: #{tpu_custom_call.1} parent=5 // pred_check_branch
        %721 = sbr.rel (%p719) target = $region64
      $region63: #{tpu_custom_call.1} parent=5 // pred_region
        %s722 = ssub.s32 %s23, 2
        // Predicated region
        $region65: #{tpu_custom_call.1} parent=63 // pred_check
          %p723 = pneg %p167
        $region66: #{tpu_custom_call.1} parent=63 // pred_check_branch
          %725 = sbr.rel (%p723) target = $region68
        $region67: #{tpu_custom_call.1} parent=63 // pred_region
          %s726 = sand.u32 %s152, 1
          %s727 = scalar_lea.sflag [#allocation4], %s726
          %s728 = sand.u32 %s152, 1
          %s729 = smul.addr %s728, 8
          %s730 = scalar_lea.vmem [#allocation8], %s729
          %731 = dma.done %s727, 128
        $region68: #{tpu_custom_call.1} parent=63 // pred_fallthru
          _
        // Predicated region
        $region69: #{tpu_custom_call.1} parent=63 // pred_check
          %p732 = pneg %p195
        $region70: #{tpu_custom_call.1} parent=63 // pred_check_branch
          %734 = sbr.rel (%p732) target = $region72
        $region71: #{tpu_custom_call.1} parent=63 // pred_region
          %s735 = sand.u32 %s29, 1
          %s736 = scalar_lea.sflag [#allocation10], %s735
          %s737 = sand.u32 %s180, 1
          %s738 = smul.addr %s737, 8
          %s739 = scalar_lea.vmem [#allocation9], %s738
          %740 = dma.done %s736, 128
        $region72: #{tpu_custom_call.1} parent=63 // pred_fallthru
          _
        // Predicated region
        $region73: #{tpu_custom_call.1} parent=63 // pred_check
          %p741 = pneg %p223
        $region74: #{tpu_custom_call.1} parent=63 // pred_check_branch
          %743 = sbr.rel (%p741) target = $region76
        $region75: #{tpu_custom_call.1} parent=63 // pred_region
          %s744 = sand.u32 %s29, 1
          %s745 = scalar_lea.sflag [#allocation10], %s744
          %s746 = sand.u32 %s208, 1
          %s747 = smul.addr %s746, 8
          %s748 = scalar_lea.vmem [#allocation11], %s747
          %749 = dma.done %s745, 128
        $region76: #{tpu_custom_call.1} parent=63 // pred_fallthru
          _
      $region64: #{tpu_custom_call.1} parent=5 // pred_fallthru
        _
    $region6: #{tpu_custom_call.1} parent=1 // loop_footer
      %s27 = sadd.s32 1, %s23
    $region7: #{tpu_custom_call.1} parent=1 // loop_footer_branch
      %22 = sbr.rel target = $region3
    $region8: #{tpu_custom_call.1} parent=1 // loop_exit
      _
    %750 = vsyncpa [#allocation3], 1
    %s751 = scalar_lea.sflag [#allocation3], 1
    %752 = vsyncpa %s751, 1
    %753 = vsyncpa [#allocation6], 1
    %754 = vsyncpa [#allocation4], 1
    %s755 = scalar_lea.sflag [#allocation4], 1
    %756 = vsyncpa %s755, 1
    %757 = vsyncpa [#allocation10], 1
    %s758 = scalar_lea.sflag [#allocation10], 1
    %759 = vsyncpa %s758, 1

</llo_original>
